<compile_context>
chip_gen: v5e
topology: v5e:2x2
jax: 0.10.0
libtpu: 0.0.40
codegen_flags: <defaults>
</compile_context>

<pallas_src>
import functools
import math

import numpy as np
import jax
import jax.numpy as jnp
from jax.experimental import pallas as pl
from jax.experimental.pallas import tpu as pltpu


# --------------------------- VMEM budgeting ----------------------------------

@functools.lru_cache(maxsize=None)
def _vmem_budget_bytes():
    """Per-kernel scoped-VMEM budget: ~half of physical VMEM (v7x: 64 MiB ->
    32 MiB; v5e/v6e: 128 MiB -> 64 MiB), with a safe fallback of 48 MiB."""
    cap = None
    try:
        cap = getattr(pltpu.get_tpu_info(), "vmem_capacity_bytes", None)
    except Exception:   # query unavailable -> conservative default
        cap = None
    if not cap:
        cap = 96 * 1024 * 1024
    return int(max(min(cap // 2, 96 * 1024 * 1024), 32 * 1024 * 1024))


# --------------------------- Pallas kernels ----------------------------------

def _torgb_kernel(wmod_ref, bias_ref, x_ref, o_ref):
    # wmod_ref: (1, O, C)   bias_ref: (O, 1) f32
    # x_ref   : (1, C, T)   o_ref   : (1, O, T)
    acc = jnp.dot(wmod_ref[0], x_ref[0], preferred_element_type=jnp.float32)
    o_ref[0] = (acc + bias_ref[...]).astype(o_ref.dtype)


def _torgb_skip_kernel(wmod_ref, bias_ref, x_ref, skip_ref, o_ref):
    # Same, fused with the (already upsampled, bf16-streamed) skip tile add.
    acc = jnp.dot(wmod_ref[0], x_ref[0], preferred_element_type=jnp.float32)
    acc = acc + bias_ref[...] + skip_ref[0].astype(jnp.float32)
    o_ref[0] = acc.astype(o_ref.dtype)


def _upsample_kernel(uh_ref, uwt_ref, skip_ref, o_ref):
    # upfirdn2d(up=2, down=1, pad=(2,1), kernel=outer([1,3,3,1])*4/sum) as a
    # separable linear map:  out(tile) = Uh(tile rows) @ skip @ Uw^T.
    # Row pass is done per channel FIRST (so per-tile work is O(th*Hs*Ws) with a
    # tiny (th, Ws) intermediate), then the column pass is batched across all
    # channels into one MXU call.
    # uh_ref: (th, Hs)  uwt_ref: (Ws, W)  skip_ref: (1, C, Hs, Ws)
    # o_ref : (1, C, th, W)
    uh = uh_ref[...]
    uwt = uwt_ref[...]
    C, th, W = o_ref.shape[1], o_ref.shape[2], o_ref.shape[3]
    rows = [jnp.dot(uh, skip_ref[0, c], preferred_element_type=jnp.float32)
            for c in range(C)]                                   # C x (th, Ws)
    stacked = jnp.concatenate(rows, axis=0).astype(uwt.dtype)    # (C*th, Ws)
    res = jnp.dot(stacked, uwt, preferred_element_type=jnp.float32)  # (C*th, W)
    o_ref[0] = res.reshape(C, th, W).astype(o_ref.dtype)


# --------------------------- tiling helpers ----------------------------------

def _choose_spatial_tile(H, W, C, O, x_isz, out_isz, skip_isz,
                         target_x_bytes, budget, prefer_even_tiles):
    """Largest row count th dividing H such that the flattened tile T = th*W is
    lane-aligned (multiple of 128, or the full image), the streamed x block is
    near target_x_bytes, and the double-buffered working set fits `budget`."""
    per_elem = 2 * (C * x_isz + O * (out_isz + skip_isz))          # per pixel
    fixed = 2 * (O * C * x_isz + O * 4) + (256 << 10)              # wmod+bias+slack
    t_budget = max((budget - fixed) // max(per_elem, 1), 0)
    t_target = max(target_x_bytes // max(C * x_isz, 1), 128)
    t_cap = min(t_budget, t_target)

    valid = [th for th in range(1, H + 1)
             if H % th == 0 and (th == H or (th * W) % 128 == 0)]
    fit = [th for th in valid if th * W <= t_cap]
    if not fit:
        th_min = min(valid)
        if th_min * W * per_elem + fixed > budget:
            # TODO(synk): add a W (lane) split for pathologically wide images.
            raise ValueError("ToRGB: smallest lane-aligned spatial tile exceeds "
                             "the VMEM budget")
        return th_min
    best = max(fit)
    if prefer_even_tiles and (H // best) % 2 == 1:
        even = [th for th in fit if (H // th) % 2 == 0]
        if even and 2 * max(even) >= best:     # never give up >2x tile size
            best = max(even)
    return best


def _choose_upsample_row_tile(H, Hs, Ws, W, C, out_isz, budget):
    """Output-row tile for the upsample kernel: th multiple of 8 (or full H)
    dividing H, with the full double-buffered working set within `budget`."""
    bf = 2  # bf16 streamed operands / filter matrices
    def ws_bytes(th):
        work = 2 * (C * Hs * Ws * bf          # resident skip block
                    + th * Hs * bf            # uh tile
                    + Ws * W * bf             # uwt
                    + C * th * W * out_isz)   # out tile
        work += C * th * (Ws * (4 + bf) + W * 4)   # in-kernel intermediates
        return work + (256 << 10)
    valid = [th for th in range(1, H + 1)
             if H % th == 0 and (th == H or th % 8 == 0)]
    fit = [th for th in valid if ws_bytes(th) <= budget]
    if not fit:
        # TODO(synk): add a W (lane) split for very large skip resolutions.
        raise ValueError("Upsample: working set exceeds the VMEM budget")
    return max(fit)


def _upfirdn_up2_matrix(n, blur=(1.0, 3.0, 3.0, 1.0), dtype=jnp.bfloat16):
    """1-D factor of the StyleGAN2 Upsample (up=2, down=1, pad=(2,1)).
    Taps scale to {0.25, 0.75}, exact in bf16."""
    k = np.asarray(blur, np.float32)
    kflip = k[::-1]
    U = np.zeros((2 * n, n), np.float32)
    for y in range(2 * n):
        for a in range(n):
            i = 2 * a + 2 - y            # tap hitting the non-zero-stuffed sample
            if 0 <= i < k.shape[0]:
                U[y, a] = kflip[i]
    scale = math.sqrt(4.0 / float(np.outer(k, k).sum()))   # = 0.25 exactly
    return jnp.asarray(U * scale, dtype=dtype)


# --------------------------- host-side glue ----------------------------------

def upsample_blur(skip, *, row_tile=None, out_dtype=jnp.bfloat16):
    """Pallas Upsample([1,3,3,1], factor=2) on NCHW; all channels per block,
    output row-tiled (W lane-dense), bf16 streaming with f32 MXU accumulation."""
    B, C, Hs, Ws = skip.shape
    H, W = 2 * Hs, 2 * Ws
    budget = _vmem_budget_bytes()
    uh = _upfirdn_up2_matrix(Hs)            # (H, Hs)  bf16
    uwt = _upfirdn_up2_matrix(Ws).T         # (Ws, W)  bf16
    out_isz = jnp.dtype(out_dtype).itemsize
    if row_tile is None:
        th = _choose_upsample_row_tile(H, Hs, Ws, W, C, out_isz, budget)
    else:
        th = row_tile
        assert H % th == 0 and (th == H or th % 8 == 0), "bad upsample row_tile"
    grid = (B, H // th)   # row tile innermost -> skip/uwt blocks stay resident
    return pl.pallas_call(
        _upsample_kernel,
        out_shape=jax.ShapeDtypeStruct((B, C, H, W), out_dtype),
        grid=grid,
        in_specs=[
            pl.BlockSpec((th, Hs), lambda b, t: (t, 0)),
            pl.BlockSpec((Ws, W), lambda b, t: (0, 0)),
            pl.BlockSpec((1, C, Hs, Ws), lambda b, t: (b, 0, 0, 0)),
        ],
        out_specs=pl.BlockSpec((1, C, th, W), lambda b, t: (b, 0, t, 0)),
        compiler_params=pltpu.CompilerParams(
            dimension_semantics=("parallel", "parallel"),
            vmem_limit_bytes=budget),
    )(uh, uwt, skip.astype(jnp.bfloat16))


def init_torgb_params(key, in_channel, style_dim, out_channel=3):
    """Deterministic init matching ToRGB.__init__ parameter shapes."""
    kw, km = jax.random.split(key)
    return {
        # ModulatedConv2d.weight: (1, out, in, 1, 1) ~ N(0, 1)
        "conv_weight": jax.random.normal(
            kw, (1, out_channel, in_channel, 1, 1), jnp.float32),
        # EqualLinear(style_dim -> in_channel): weight (in, style_dim), bias_init=1
        "mod_weight": jax.random.normal(km, (in_channel, style_dim), jnp.float32),
        "mod_bias": jnp.ones((in_channel,), jnp.float32),
        # ToRGB.bias: zeros(1, out, 1, 1)
        "bias": jnp.zeros((1, out_channel, 1, 1), jnp.float32),
    }


def torgb_forward(x, style, params, skip=None, *, compute_dtype=jnp.bfloat16,
                  x_tile_bytes=None, upsample_row_tile=None):
    B, C, H, W = x.shape
    S = style.shape[1]
    O = params["conv_weight"].shape[1]
    mod_scale = 1.0 / math.sqrt(S)            # EqualLinear scale (lr_mul = 1)
    conv_scale = 1.0 / math.sqrt(C * 1 * 1)   # ModulatedConv2d scale, 1x1 kernel

    # Hoisted style modulation (tiny, plain JAX, f32).
    hi = jax.lax.Precision.HIGHEST
    s = jnp.dot(style, (params["mod_weight"] * mod_scale).T, precision=hi)
    s = s + params["mod_bias"][None, :]                                # (B, C)
    convw = params["conv_weight"][0, :, :, 0, 0] * conv_scale          # (O, C)
    wmod = (convw[None, :, :] * s[:, None, :]).astype(compute_dtype)   # (B, O, C)
    bias = params["bias"].reshape(O, 1).astype(jnp.float32)            # (O, 1)

    x_flat = x.reshape(B, C, H * W).astype(compute_dtype)              # streamed

    budget = _vmem_budget_bytes()
    x_isz = jnp.dtype(compute_dtype).itemsize
    out_isz = jnp.dtype(x.dtype).itemsize
    skip_dtype = jnp.bfloat16
    skip_isz = jnp.dtype(skip_dtype).itemsize if skip is not None else 0
    if x_tile_bytes is None:
        x_tile_bytes = min(budget // 6, 8 * 1024 * 1024)   # C/dtype-aware target

    th = _choose_spatial_tile(H, W, C, O, x_isz, out_isz, skip_isz,
                              x_tile_bytes, budget,
                              prefer_even_tiles=(B % 2 == 1))
    T = th * W
    grid = (B, (H * W) // T)   # spatial tile innermost -> wmod/bias stay resident

    in_specs = [
        pl.BlockSpec((1, O, C), lambda b, t: (b, 0, 0)),
        pl.BlockSpec((O, 1), lambda b, t: (0, 0)),
        pl.BlockSpec((1, C, T), lambda b, t: (b, 0, t)),
    ]
    out_spec = pl.BlockSpec((1, O, T), lambda b, t: (b, 0, t))
    out_shape = jax.ShapeDtypeStruct((B, O, H * W), x.dtype)
    cparams = pltpu.CompilerParams(
        dimension_semantics=("parallel", "parallel"),
        vmem_limit_bytes=budget)

    if skip is None:
        out_flat = pl.pallas_call(
            _torgb_kernel, out_shape=out_shape, grid=grid,
            in_specs=in_specs, out_specs=out_spec, compiler_params=cparams,
        )(wmod, bias, x_flat)
    else:
        assert skip.shape == (B, O, H // 2, W // 2)
        # TODO(synk): fully fuse the upsample + skip add into the main kernel
        # (read skip at quarter resolution and apply the separable blur to the
        # (1, O, th, W) out tile in-kernel) to remove this HBM roundtrip.
        skip_up = upsample_blur(skip, row_tile=upsample_row_tile,
                                out_dtype=skip_dtype)
        skip_up = skip_up.reshape(B, O, H * W)
        out_flat = pl.pallas_call(
            _torgb_skip_kernel, out_shape=out_shape, grid=grid,
            in_specs=in_specs + [pl.BlockSpec((1, O, T), lambda b, t: (b, 0, t))],
            out_specs=out_spec, compiler_params=cparams,
        )(wmod, bias, x_flat, skip_up)

    return out_flat.reshape(B, O, H, W)


# --------------------------- pure-JAX reference ------------------------------

def _upsample_reference(skip, blur=(1.0, 3.0, 3.0, 1.0)):
    """Independent upfirdn2d(up=2, down=1, pad=(2,1)) reference via lax.conv."""
    k1 = jnp.asarray(blur, jnp.float32)
    k2 = jnp.outer(k1, k1)
    k2 = k2 / k2.sum() * 4.0                         # make_kernel(k) * factor**2
    w = k2[::-1, ::-1][None, None, :, :]             # flipped (true convolution)
    B, C, Hs, Ws = skip.shape
    y = jax.lax.conv_general_dilated(
        skip.reshape(B * C, 1, Hs, Ws).astype(jnp.float32), w,
        window_strides=(1, 1), padding=((2, 2), (2, 2)), lhs_dilation=(2, 2),
        dimension_numbers=("NCHW", "OIHW", "NCHW"),
        precision=jax.lax.Precision.HIGHEST)
    return y.reshape(B, C, 2 * Hs, 2 * Ws)


def torgb_reference(x, style, params, skip=None):
    B, C, H, W = x.shape
    S = style.shape[1]
    hi = jax.lax.Precision.HIGHEST
    s = jnp.dot(style, (params["mod_weight"] / math.sqrt(S)).T, precision=hi)
    s = s + params["mod_bias"][None, :]
    w = params["conv_weight"][0, :, :, 0, 0] / math.sqrt(C)
    out = jnp.einsum("oc,bc,bchw->bohw", w, s, x, precision=hi) + params["bias"]
    if skip is not None:
        out = out + _upsample_reference(skip)
    return out


# --------------------------------- main ---------------------------------------

if __name__ == "__main__":
    key = jax.random.PRNGKey(0)
    B, C, H, W = 2, 4, 16, 16
    style_dim, out_ch = 32, 3
    k1, k2, k3, k4 = jax.random.split(key, 4)

    x = jax.random.normal(k1, (B, C, H, W), jnp.float32)
    style = jax.random.normal(k2, (B, style_dim), jnp.float32)
    skip = jax.random.normal(k3, (B, out_ch, H // 2, W // 2), jnp.float32)
    params = init_torgb_params(k4, C, style_dim, out_ch)

    ref_skip = torgb_reference(x, style, params, skip=skip)
    ref_plain = torgb_reference(x, style, params, skip=None)

    # f32 streaming, forced multi-tile (exercises the byte-capped spatial grid
    # and the row-tiled upsample path).
    out_tiled = jax.block_until_ready(torgb_forward(
        x, style, params, skip=skip, compute_dtype=jnp.float32,
        x_tile_bytes=1024, upsample_row_tile=8))
    assert out_tiled.shape == (B, out_ch, H, W)
    assert bool(jnp.allclose(out_tiled, ref_skip, atol=5e-2, rtol=5e-2)), \
        "f32 tiled skip path mismatch"

    # f32, default (single) tile: tiling must not change the result.
    out_one = jax.block_until_ready(torgb_forward(
        x, style, params, skip=skip, compute_dtype=jnp.float32))
    assert bool(jnp.allclose(out_one, out_tiled, atol=1e-5, rtol=1e-5)), \
        "tiling changed the result"

    # default bf16-streamed path, with and without skip.
    out_bf16 = jax.block_until_ready(torgb_forward(x, style, params, skip=skip))
    assert bool(jnp.allclose(out_bf16, ref_skip, atol=5e-2, rtol=5e-2)), \
        "bf16 skip path mismatch"

    out_ns = jax.block_until_ready(torgb_forward(
        x, style, params, skip=None, x_tile_bytes=1024))
    assert bool(jnp.allclose(out_ns, ref_plain, atol=5e-2, rtol=5e-2)), \
        "no-skip path mismatch"

    print("KERNEL_OK")
</pallas_src>

<mosaic_0001>
module attributes {stable_mosaic.version = 11 : i64} {
  func.func @_upsample_kernel(%arg0: i32, %arg1: i32, %arg2: memref<8x8xbf16, #tpu.memory_space<vmem>>, %arg3: memref<8x16xbf16, #tpu.memory_space<vmem>>, %arg4: memref<1x3x8x8xbf16, #tpu.memory_space<vmem>>, %arg5: memref<1x3x8x16xbf16, #tpu.memory_space<vmem>>) attributes {dimension_semantics = [#tpu.dimension_semantics<parallel>, #tpu.dimension_semantics<parallel>], iteration_bounds = array<i64: 2, 2>, scalar_prefetch = 0 : i64, scratch_operands = 0 : i64, tpu.core_type = #tpu.core_type<tc>, window_params = [{transform_indices = @transform_0, window_bounds = array<i64: 8, 8>}, {pipeline_mode = #tpu.pipeline_mode<synchronous>, transform_indices = @transform_1, window_bounds = array<i64: 8, 16>}, {transform_indices = @transform_2, window_bounds = array<i64: 1, 3, 8, 8>}, {transform_indices = @transform_3, window_bounds = array<i64: 1, 3, 8, 16>}]} {
    %c0 = arith.constant 0 : index
    %c0_0 = arith.constant 0 : index
    %0 = vector.load %arg2[%c0, %c0_0] : memref<8x8xbf16, #tpu.memory_space<vmem>>, vector<8x8xbf16>
    %c0_1 = arith.constant 0 : index
    %c0_2 = arith.constant 0 : index
    %1 = vector.load %arg3[%c0_1, %c0_2] : memref<8x16xbf16, #tpu.memory_space<vmem>>, vector<8x16xbf16>
    %c0_3 = arith.constant 0 : index
    %c0_4 = arith.constant 0 : index
    %c0_5 = arith.constant 0 : index
    %c0_6 = arith.constant 0 : index
    %2 = vector.load %arg4[%c0_3, %c0_4, %c0_5, %c0_6] : memref<1x3x8x8xbf16, #tpu.memory_space<vmem>>, vector<1x1x8x8xbf16>
    %3 = vector.shape_cast %2 : vector<1x1x8x8xbf16> to vector<8x8xbf16>
    %cst = arith.constant dense<0.000000e+00> : vector<8x8xf32>
    %4 = tpu.matmul %0, %3, %cst {dimension_numbers = #tpu.dot_dimension_numbers<[1], [0], [0], [1], [0, 0, 1, 1], [], []>} : vector<8x8xbf16>, vector<8x8xbf16>, vector<8x8xf32> -> vector<8x8xf32>
    %c0_7 = arith.constant 0 : index
    %c1 = arith.constant 1 : index
    %c0_8 = arith.constant 0 : index
    %c0_9 = arith.constant 0 : index
    %5 = vector.load %arg4[%c0_7, %c1, %c0_8, %c0_9] : memref<1x3x8x8xbf16, #tpu.memory_space<vmem>>, vector<1x1x8x8xbf16>
    %6 = vector.shape_cast %5 : vector<1x1x8x8xbf16> to vector<8x8xbf16>
    %cst_10 = arith.constant dense<0.000000e+00> : vector<8x8xf32>
    %7 = tpu.matmul %0, %6, %cst_10 {dimension_numbers = #tpu.dot_dimension_numbers<[1], [0], [0], [1], [0, 0, 1, 1], [], []>} : vector<8x8xbf16>, vector<8x8xbf16>, vector<8x8xf32> -> vector<8x8xf32>
    %c0_11 = arith.constant 0 : index
    %c2 = arith.constant 2 : index
    %c0_12 = arith.constant 0 : index
    %c0_13 = arith.constant 0 : index
    %8 = vector.load %arg4[%c0_11, %c2, %c0_12, %c0_13] : memref<1x3x8x8xbf16, #tpu.memory_space<vmem>>, vector<1x1x8x8xbf16>
    %9 = vector.shape_cast %8 : vector<1x1x8x8xbf16> to vector<8x8xbf16>
    %cst_14 = arith.constant dense<0.000000e+00> : vector<8x8xf32>
    %10 = tpu.matmul %0, %9, %cst_14 {dimension_numbers = #tpu.dot_dimension_numbers<[1], [0], [0], [1], [0, 0, 1, 1], [], []>} : vector<8x8xbf16>, vector<8x8xbf16>, vector<8x8xf32> -> vector<8x8xf32>
    %11 = tpu.concatenate %4, %7, %10 in 0 : vector<8x8xf32>, vector<8x8xf32>, vector<8x8xf32> -> vector<24x8xf32>
    %12 = arith.truncf %11 : vector<24x8xf32> to vector<24x8xbf16>
    %cst_15 = arith.constant dense<0.000000e+00> : vector<24x16xf32>
    %13 = tpu.matmul %12, %1, %cst_15 {dimension_numbers = #tpu.dot_dimension_numbers<[1], [0], [0], [1], [0, 0, 1, 1], [], []>} : vector<24x8xbf16>, vector<8x16xbf16>, vector<24x16xf32> -> vector<24x16xf32>
    %14 = vector.shape_cast %13 : vector<24x16xf32> to vector<3x8x16xf32>
    %15 = arith.truncf %14 : vector<3x8x16xf32> to vector<3x8x16xbf16>
    %c0_16 = arith.constant 0 : index
    %c0_17 = arith.constant 0 : index
    %c0_18 = arith.constant 0 : index
    %c0_19 = arith.constant 0 : index
    %16 = vector.load %arg5[%c0_16, %c0_17, %c0_18, %c0_19] : memref<1x3x8x16xbf16, #tpu.memory_space<vmem>>, vector<1x3x8x16xbf16>
    %17 = vector.shape_cast %16 : vector<1x3x8x16xbf16> to vector<3x8x16xbf16>
    %18 = vector.shape_cast %15 : vector<3x8x16xbf16> to vector<1x3x8x16xbf16>
    tpu.vector_store %arg5[%c0_16, %c0_17, %c0_18, %c0_19], %18 {strides = array<i32>} : memref<1x3x8x16xbf16, #tpu.memory_space<vmem>>, vector<1x3x8x16xbf16>,
    return
  }
  func.func @transform_0(%arg0: i32, %arg1: i32) -> (i32, i32) {
    %c0_i32 = arith.constant 0 : i32
    %c0_i32_0 = arith.constant 0 : i32
    return %arg1, %c0_i32 : i32, i32
  }
  func.func @transform_1(%arg0: i32, %arg1: i32) -> (i32, i32) {
    %c0_i32 = arith.constant 0 : i32
    %c0_i32_0 = arith.constant 0 : i32
    %c0_i32_1 = arith.constant 0 : i32
    return %c0_i32, %c0_i32_0 : i32, i32
  }
  func.func @transform_2(%arg0: i32, %arg1: i32) -> (i32, i32, i32, i32) {
    %c0_i32 = arith.constant 0 : i32
    %c0_i32_0 = arith.constant 0 : i32
    %c0_i32_1 = arith.constant 0 : i32
    %c0_i32_2 = arith.constant 0 : i32
    return %arg0, %c0_i32, %c0_i32_0, %c0_i32_1 : i32, i32, i32, i32
  }
  func.func @transform_3(%arg0: i32, %arg1: i32) -> (i32, i32, i32, i32) {
    %c0_i32 = arith.constant 0 : i32
    %c0_i32_0 = arith.constant 0 : i32
    %c0_i32_1 = arith.constant 0 : i32
    return %arg0, %c0_i32, %arg1, %c0_i32_0 : i32, i32, i32, i32
  }
}

</mosaic_0001>

<llo_original>
// kernel: tpu_custom_call.1
$region0: #{tpu_custom_call.1}
  #allocation0 [shape = 'u32[]', space=smem, size = 0x4, offset = 0x4, fixed_abs, tag = 'smem constant byte address 0x4 - core index']
  #allocation1 [shape = 'u32[72,128]{1,0:T(1,128)}', space=vmem, size = 0x9000, scoped, tag = 'internal scratch']
  %s0 = inlined_call_operand.vmem [shape: bf16[16,8], index: 0, kind: input, shape index: {}]
  %s1 = inlined_call_operand.vmem [shape: bf16[8,16], index: 1, kind: input, shape index: {}]
  %s2 = inlined_call_operand.hbm [shape: bf16[2,3,8,8], index: 2, kind: input, shape index: {}]
  %s3 = inlined_call_operand.hbm [shape: bf16[2,3,16,16], index: 3, kind: output, shape index: {}]
  %s4 = sld [smem:[#allocation0]]
  $region49: #{tpu_custom_call.1} parent=0
    _
  %s6 = ssub.s32 1, %s4
  %s7 = scalar_select 0, %s6, %s4
  $region1: #{tpu_custom_call.1} parent=0
    #allocation2 [shape = 'u8[12288]{0}', space=vmem, size = 0x3000, scoped, tag = 'input window, operand 2']
    #allocation3 [shape = 's32[2]{0}', space=sflag, size = 0x8, scoped, tag = 'scoped memory for tpu_custom_call.1']
    #allocation4 [shape = 's32[2]{0}', space=sflag, size = 0x8, scoped, tag = 'scoped memory for tpu_custom_call.1']
    #allocation5 [shape = 'u8[12288]{0}', space=vmem, size = 0x3000, scoped, tag = 'output window, operand 0']
    %8 = vsyncpa [#allocation3], 0
    %s9 = scalar_lea.sflag [#allocation3], 1
    %10 = vsyncpa %s9, 0
    %11 = vsyncpa [#allocation4], 0
    %s12 = scalar_lea.sflag [#allocation4], 1
    %13 = vsyncpa %s12, 0
    loop: start=0, step=1, limit=6
    $region2: #{tpu_custom_call.1} parent=1 // loop_pre_header
      _
    $region3: #{tpu_custom_call.1} parent=1 // loop_header
      %s15 = sphi 0, %s19
      %p16 = scmp.ge.s32.totalorder %s15, 6
      %s22 = sphi 0, %s34
      %s23 = sphi 0, %s30
      %s24 = sphi 0, %s22
      %s25 = sphi 0, %s23
      %s26 = sphi 0, %s24
      %s27 = sphi 0, %s25
      %s37 = sphi 0, %s39
      %s40 = sphi 0, %s37
      %s41 = sphi 0, %s40
      %s57 = sphi 0, %s41
      %s61 = sphi 0, %s61
      %s63 = sphi 0, %s61
      %s64 = sphi 0, %s63
      %s78 = sphi 0, %s64
      %s84 = sphi 0, %s86
      %s87 = sphi 0, %s84
      %s88 = sphi 0, %s87
      %s104 = sphi 0, %s88
      %s112 = sphi 0, %s114
      %s115 = sphi 0, %s112
      %s116 = sphi 0, %s115
      %s132 = sphi 0, %s116
    $region4: #{tpu_custom_call.1} parent=1 // loop_header_branch
      %18 = sbr.rel (%p16) target = $region8
    $region5: #{tpu_custom_call.1} parent=1 // loop_body
      %s20 = ssub.s32 %s15, 1
      %s21 = ssub.s32 %s15, 2
      %s28 = sadd.s32 1, %s23
      %p29 = scmp.ge.s32.totalorder %s28, 2
      %s30 = scalar_select %p29, 0, %s28
      %s31 = sadd.s32 1, %s22
      %s32 = scalar_select %p29, %s31, %s22
      %p33 = scmp.ge.s32.totalorder %s32, 2
      %s34 = scalar_select %p33, 0, %s32
      %s35 = ssub.s32 %s23, %s30
      %p36 = scmp.eq.s32.totalorder %s35, 0
      %s38 = sadd.s32 %s37, 1
      %s39 = scalar_select %p36, %s37, %s38
      %p42 = pneg %p36
      %p43 = scmp.eq.s32.totalorder %s15, 3
      %p44 = por %p42, %p43
      %p45 = scmp.ne.s32.totalorder %s37, %s40
      %p46 = scmp.eq.s32.totalorder %s15, 0
      %p47 = por %p45, %p46
      %p48 = scmp.ne.s32.totalorder %s37, %s40
      %p49 = scmp.eq.s32.totalorder %s20, 3
      %p50 = por %p48, %p49
      %p51 = scmp.ne.s32.totalorder %s40, %s41
      %p52 = scmp.eq.s32.totalorder %s20, 0
      %p53 = por %p51, %p52
      %p54 = scmp.ne.s32.totalorder %s40, %s41
      %p55 = scmp.eq.s32.totalorder %s21, 3
      %p56 = por %p54, %p55
      %p58 = scmp.ne.s32.totalorder %s41, %s57
      %p59 = scmp.eq.s32.totalorder %s21, 0
      %p60 = por %p58, %p59
      %s62 = sadd.s32 %s61, 1
      %p65 = scmp.eq.s32.totalorder %s15, 3
      %p66 = scmp.ne.s32.totalorder %s61, %s63
      %p67 = scmp.eq.s32.totalorder %s15, 0
      %p68 = por %p66, %p67
      %p69 = scmp.ne.s32.totalorder %s61, %s63
      %p70 = scmp.eq.s32.totalorder %s20, 3
      %p71 = por %p69, %p70
      %p72 = scmp.ne.s32.totalorder %s63, %s64
      %p73 = scmp.eq.s32.totalorder %s20, 0
      %p74 = por %p72, %p73
      %p75 = scmp.ne.s32.totalorder %s63, %s64
      %p76 = scmp.eq.s32.totalorder %s21, 3
      %p77 = por %p75, %p76
      %p79 = scmp.ne.s32.totalorder %s64, %s78
      %p80 = scmp.eq.s32.totalorder %s21, 0
      %p81 = por %p79, %p80
      %s82 = ssub.s32 %s22, %s34
      %p83 = scmp.eq.s32.totalorder %s82, 0
      %s85 = sadd.s32 %s84, 1
      %s86 = scalar_select %p83, %s84, %s85
      %p89 = pneg %p83
      %p90 = scmp.eq.s32.totalorder %s15, 3
      %p91 = por %p89, %p90
      %p92 = scmp.ne.s32.totalorder %s84, %s87
      %p93 = scmp.eq.s32.totalorder %s15, 0
      %p94 = por %p92, %p93
      %p95 = scmp.ne.s32.totalorder %s84, %s87
      %p96 = scmp.eq.s32.totalorder %s20, 3
      %p97 = por %p95, %p96
      %p98 = scmp.ne.s32.totalorder %s87, %s88
      %p99 = scmp.eq.s32.totalorder %s20, 0
      %p100 = por %p98, %p99
      %p101 = scmp.ne.s32.totalorder %s87, %s88
      %p102 = scmp.eq.s32.totalorder %s21, 3
      %p103 = por %p101, %p102
      %p105 = scmp.ne.s32.totalorder %s88, %s104
      %p106 = scmp.eq.s32.totalorder %s21, 0
      %p107 = por %p105, %p106
      %s108 = ssub.s32 %s22, %s34
      %s109 = ssub.s32 %s23, %s30
      %s110 = sor.u32 %s108, %s109
      %p111 = scmp.eq.s32.totalorder %s110, 0
      %s113 = sadd.s32 %s112, 1
      %s114 = scalar_select %p111, %s112, %s113
      %p117 = pneg %p111
      %p118 = scmp.eq.s32.totalorder %s15, 3
      %p119 = por %p117, %p118
      %p120 = scmp.ne.s32.totalorder %s112, %s115
      %p121 = scmp.eq.s32.totalorder %s15, 0
      %p122 = por %p120, %p121
      %p123 = scmp.ne.s32.totalorder %s112, %s115
      %p124 = scmp.eq.s32.totalorder %s20, 3
      %p125 = por %p123, %p124
      %p126 = scmp.ne.s32.totalorder %s115, %s116
      %p127 = scmp.eq.s32.totalorder %s20, 0
      %p128 = por %p126, %p127
      %p129 = scmp.ne.s32.totalorder %s115, %s116
      %p130 = scmp.eq.s32.totalorder %s21, 3
      %p131 = por %p129, %p130
      %p133 = scmp.ne.s32.totalorder %s116, %s132
      %p134 = scmp.eq.s32.totalorder %s21, 0
      %p135 = por %p133, %p134
      %p136 = scmp.le.s32.totalorder 1, %s15
      %p137 = scmp.lt.s32.totalorder %s15, 5
      %p138 = pnand %p136, %p137
      %p139 = pneg %p138
      // Predicated region
      $region9: #{tpu_custom_call.1} parent=5 // pred_check
        _
      $region10: #{tpu_custom_call.1} parent=5 // pred_check_branch
        %141 = sbr.rel (%p138) target = $region12
      $region11: #{tpu_custom_call.1} parent=5 // pred_region
        %s142 = ssub.s32 %s15, 1
        // Predicated region
        $region13: #{tpu_custom_call.1} parent=11 // pred_check
          %p143 = pneg %p74
        $region14: #{tpu_custom_call.1} parent=11 // pred_check_branch
          %145 = sbr.rel (%p143) target = $region16
        $region15: #{tpu_custom_call.1} parent=11 // pred_region
          _
        $region16: #{tpu_custom_call.1} parent=11 // pred_fallthru
          _
      $region12: #{tpu_custom_call.1} parent=5 // pred_fallthru
        _
      %p146 = scmp.lt.s32.totalorder %s15, 4
      // Predicated region
      $region17: #{tpu_custom_call.1} parent=5 // pred_check
        %p147 = pneg %p146
      $region18: #{tpu_custom_call.1} parent=5 // pred_check_branch
        %149 = sbr.rel (%p147) target = $region20
      $region19: #{tpu_custom_call.1} parent=5 // pred_region
        // Predicated region
        $region21: #{tpu_custom_call.1} parent=19 // pred_check
          %p150 = pneg %p47
        $region22: #{tpu_custom_call.1} parent=19 // pred_check_branch
          %152 = sbr.rel (%p150) target = $region24
        $region23: #{tpu_custom_call.1} parent=19 // pred_region
          %p153 = scmp.lt.s32.totalorder %s23, 1
          %s154 = scalar_select %p153, %s23, 1
          %s155 = smul.addr %s154, 4
          %s156 = scalar_lea.vmem %s0, %s155
        $region24: #{tpu_custom_call.1} parent=19 // pred_fallthru
          _
        // Predicated region
        $region25: #{tpu_custom_call.1} parent=19 // pred_check
          %p157 = pneg %p94
        $region26: #{tpu_custom_call.1} parent=19 // pred_check_branch
          %159 = sbr.rel (%p157) target = $region28
        $region27: #{tpu_custom_call.1} parent=19 // pred_region
          %s160 = sand.u32 %s84, 1
          %s161 = scalar_lea.sflag [#allocation3], %s160
          %s162 = sand.u32 %s84, 1
          %s163 = smul.addr %s162, 12
          %s164 = scalar_lea.vmem [#allocation2], %s163
          %166 = vsyncadd %s161, 0
          %s167 = smul.addr %s22, 3
          %s168 = smul.addr %s167, 4
          %s169 = scalar_lea.hbm %s2, %s168
          %s170 = sshll.u32 %s169, 4
          %s171 = int_to_ptr.hbm [resolvable:$true] %s170
          %s172 = sshll.u32 %s164, 4
          %s173 = int_to_ptr.vmem [resolvable:$true] %s172
          %178 = dma.hbm_to_vmem [thread:$0]  %s171, 192, %s173, %s161, 64, 64, 4
        $region28: #{tpu_custom_call.1} parent=19 // pred_fallthru
          _
      $region20: #{tpu_custom_call.1} parent=5 // pred_fallthru
        _
      %p179 = scmp.le.s32.totalorder 1, %s15
      %p180 = scmp.lt.s32.totalorder %s15, 5
      %p181 = pnand %p179, %p180
      %p182 = pneg %p181
      // Predicated region
      $region29: #{tpu_custom_call.1} parent=5 // pred_check
        _
      $region30: #{tpu_custom_call.1} parent=5 // pred_check_branch
        %184 = sbr.rel (%p181) target = $region32
      $region31: #{tpu_custom_call.1} parent=5 // pred_region
        %s185 = ssub.s32 %s15, 1
        %s186 = sand.u32 %s87, 1
        %s187 = scalar_lea.sflag [#allocation3], %s186
        %s188 = sand.u32 %s87, 1
        %s189 = smul.addr %s188, 12
        %s190 = scalar_lea.vmem [#allocation2], %s189
        // Predicated region
        $region33: #{tpu_custom_call.1} parent=31 // pred_check
          %p191 = pneg %p100
        $region34: #{tpu_custom_call.1} parent=31 // pred_check_branch
          %193 = sbr.rel (%p191) target = $region36
        $region35: #{tpu_custom_call.1} parent=31 // pred_region
          %195 = dma.done %s187, 192
        $region36: #{tpu_custom_call.1} parent=31 // pred_fallthru
          _
        %p196 = scmp.lt.s32.totalorder %s25, 1
        %s197 = scalar_select %p196, %s25, 1
        %s198 = smul.addr %s197, 4
        %s199 = scalar_lea.vmem %s0, %s198
        %p200 = pneg %p53
        %p201 = pneg %p50
        %p202 = pneg %p74
        %p203 = pneg %p71
        %s204 = sand.u32 %s87, 1
        %s205 = scalar_lea.sflag [#allocation3], %s204
        %s206 = sand.u32 %s87, 1
        %s207 = smul.addr %s206, 12
        %s208 = scalar_lea.vmem [#allocation2], %s207
        %p209 = pneg %p100
        %p210 = pneg %p97
        %p211 = pneg %p128
        %p212 = pneg %p125
        %s213 = sand.u32 %s115, 1
        %s214 = scalar_lea.sflag [#allocation4], %s213
        %s215 = sand.u32 %s115, 1
        %s216 = smul.addr %s215, 12
        %s217 = scalar_lea.vmem [#allocation5], %s216
        %p218 = scmp.lt.s32.totalorder %s25, 1
        %s219 = scalar_select %p218, %s25, 1
        %s220 = smul.addr %s219, 4
        %s221 = scalar_lea.vmem %s0, %s220
        %v223 = vld [vmem:[%s221] sm:$0xf]
        %v224 = vld [vmem:[%s1] sm:$0xf]
        %v225 = vld [vmem:[%s190] sm:$0xf]
        %vm226 = vcmask 64512
        %v228 = vsel %vm226, %v223, 0
        %vm230 = vcmask 1043456
        %v232 = vsel %vm230, %v225, 0
        %234 = vmatpush.bf16.msra.mxu0 0
        %235 = vmatpush.bf16.msra.mxu0 0
        %236 = vmatpush.bf16.msra.mxu0 0
        %237 = vmatpush.bf16.msra.mxu0 0
        %238 = vmatpush.bf16.msra.mxu0 0
        %239 = vmatpush.bf16.msra.mxu0 0
        %240 = vmatpush.bf16.msra.mxu0 0
        %241 = vmatpush.bf16.msra.mxu0 %v232
        %242 = vmatmul.bf16.gmra.mxu0 %v228
        %v243 = vpop.f32.mrf.mxu0
        %v244 = vadd.f32 0.0, %v243
        %v245 = vpop.f32.mrf.mxu0
        %246 = vdwg.mxu0
        %s247 = scalar_lea.vmem %s190, 4 [#allocation2]
        %v248 = vld [vmem:[%s247] sm:$0xf]
        %v250 = vsel %vm230, %v248, 0
        %252 = vmatpush.bf16.msra.mxu0 0
        %253 = vmatpush.bf16.msra.mxu0 0
        %254 = vmatpush.bf16.msra.mxu0 0
        %255 = vmatpush.bf16.msra.mxu0 0
        %256 = vmatpush.bf16.msra.mxu0 0
        %257 = vmatpush.bf16.msra.mxu0 0
        %258 = vmatpush.bf16.msra.mxu0 0
        %259 = vmatpush.bf16.msra.mxu0 %v250
        %260 = vmatmul.bf16.gmra.mxu0 %v228
        %v261 = vpop.f32.mrf.mxu0
        %v262 = vadd.f32 0.0, %v261
        %v263 = vpop.f32.mrf.mxu0
        %264 = vdwg.mxu0
        %s265 = scalar_lea.vmem %s190, 8 [#allocation2]
        %v266 = vld [vmem:[%s265] sm:$0xf]
        %v268 = vsel %vm230, %v266, 0
        %270 = vmatpush.bf16.msra.mxu0 0
        %271 = vmatpush.bf16.msra.mxu0 0
        %272 = vmatpush.bf16.msra.mxu0 0
        %273 = vmatpush.bf16.msra.mxu0 0
        %274 = vmatpush.bf16.msra.mxu0 0
        %275 = vmatpush.bf16.msra.mxu0 0
        %276 = vmatpush.bf16.msra.mxu0 0
        %277 = vmatpush.bf16.msra.mxu0 %v268
        %278 = vmatmul.bf16.gmra.mxu0 %v228
        %v279 = vpop.f32.mrf.mxu0
        %v280 = vadd.f32 0.0, %v279
        %v281 = vpop.f32.mrf.mxu0
        %282 = vdwg.mxu0
        %v283 = vpack.c.bf16 %v262, %v244
        %v284 = vpack.c.bf16 %v280, %v280
        %v286 = vsel %vm226, %v283, 0
        %v289 = vsel %vm226, %v284, 0
        %v292 = vsel %vm230, %v224, 0
        %294 = vmatpush.bf16.msra.mxu0 0
        %295 = vmatpush.bf16.msra.mxu0 0
        %296 = vmatpush.bf16.msra.mxu0 0
        %297 = vmatpush.bf16.msra.mxu0 0
        %298 = vmatpush.bf16.msra.mxu0 0
        %299 = vmatpush.bf16.msra.mxu0 0
        %300 = vmatpush.bf16.msra.mxu0 0
        %301 = vmatpush.bf16.msra.mxu0 %v292
        %302 = vmatmul.bf16.gmra.mxu0 %v286
        %v303 = vpop.f32.mrf.mxu0
        %v304 = vadd.f32 0.0, %v303
        %v305 = vpop.f32.mrf.mxu0
        %v306 = vadd.f32 0.0, %v305
        %307 = vmatmul.bf16.gmra.mxu0 %v289
        %v308 = vpop.f32.mrf.mxu0
        %v309 = vadd.f32 0.0, %v308
        %v310 = vpop.f32.mrf.mxu0
        %311 = vdwg.mxu0
        %v312 = vpack.c.bf16 %v304, %v304
        %v313 = vpack.c.bf16 %v306, %v306
        %v314 = vpack.c.bf16 %v309, %v309
        %vm315 = vcmask 125952
        %316 = vst.msk [vmem:[%s217] sm:$0xf] %vm315, %v312
        %317 = vst.msk [vmem:[%s217 + $0x4] sm:$0xf] %vm315, %v313
        %318 = vst.msk [vmem:[%s217 + $0x8] sm:$0xf] %vm315, %v314
        %s319 = sand.u32 %s115, 1
        %s320 = scalar_lea.sflag [#allocation4], %s319
        %s321 = sand.u32 %s115, 1
        %s322 = smul.addr %s321, 12
        %s323 = scalar_lea.vmem [#allocation5], %s322
        // Predicated region
        $region37: #{tpu_custom_call.1} parent=31 // pred_check
          %p324 = pneg %p125
        $region38: #{tpu_custom_call.1} parent=31 // pred_check_branch
          %326 = sbr.rel (%p324) target = $region40
        $region39: #{tpu_custom_call.1} parent=31 // pred_region
          %328 = vsyncadd %s320, 0
          %s329 = smul.addr %s24, 6
          %s330 = sadd.s32 %s25, %s329
          %s331 = smul.addr %s330, 4
          %s332 = scalar_lea.hbm %s3, %s331
          %s333 = sshll.u32 %s323, 4
          %s334 = int_to_ptr.vmem [resolvable:$true] %s333
          %s335 = sshll.u32 %s332, 4
          %s336 = int_to_ptr.hbm [resolvable:$true] %s335
          %341 = dma.vmem_to_hbm [thread:$0]  %s334, 192, %s336, %s320, 64, 128, 4
        $region40: #{tpu_custom_call.1} parent=31 // pred_fallthru
          _
      $region32: #{tpu_custom_call.1} parent=5 // pred_fallthru
        _
      %p342 = scmp.le.s32.totalorder 2, %s15
      // Predicated region
      $region41: #{tpu_custom_call.1} parent=5 // pred_check
        %p343 = pneg %p342
      $region42: #{tpu_custom_call.1} parent=5 // pred_check_branch
        %345 = sbr.rel (%p343) target = $region44
      $region43: #{tpu_custom_call.1} parent=5 // pred_region
        %s346 = ssub.s32 %s15, 2
        // Predicated region
        $region45: #{tpu_custom_call.1} parent=43 // pred_check
          %p347 = pneg %p131
        $region46: #{tpu_custom_call.1} parent=43 // pred_check_branch
          %349 = sbr.rel (%p347) target = $region48
        $region47: #{tpu_custom_call.1} parent=43 // pred_region
          %s350 = sand.u32 %s116, 1
          %s351 = scalar_lea.sflag [#allocation4], %s350
          %s352 = sand.u32 %s116, 1
          %s353 = smul.addr %s352, 12
          %s354 = scalar_lea.vmem [#allocation5], %s353
          %356 = dma.done %s351, 192
        $region48: #{tpu_custom_call.1} parent=43 // pred_fallthru
          _
      $region44: #{tpu_custom_call.1} parent=5 // pred_fallthru
        _
    $region6: #{tpu_custom_call.1} parent=1 // loop_footer
      %s19 = sadd.s32 1, %s15
    $region7: #{tpu_custom_call.1} parent=1 // loop_footer_branch
      %14 = sbr.rel target = $region3
    $region8: #{tpu_custom_call.1} parent=1 // loop_exit
      _
    %357 = vsyncpa [#allocation3], 1
    %s358 = scalar_lea.sflag [#allocation3], 1
    %359 = vsyncpa %s358, 1
    %360 = vsyncpa [#allocation4], 1
    %s361 = scalar_lea.sflag [#allocation4], 1
    %362 = vsyncpa %s361, 1

</llo_original>
